<compile_context>
chip_gen: v7x
topology: tpu7x:2x2x1
jax: 0.10.0
libtpu: 0.0.40
codegen_flags: <defaults>
</compile_context>

<pallas_src>
import functools

import jax
import jax.numpy as jnp
from jax.experimental import pallas as pl
from jax.experimental.pallas import tpu as pltpu

NEG_BIG = -1e30  # stand-in for -inf (avoids inf arithmetic); also the pad value


def _round_up(x, m):
    return ((x + m - 1) // m) * m


# ---------------------------------------------------------------------------
# shared in-kernel math
# ---------------------------------------------------------------------------
def _softmax_last(noisy, *, approx_recip):
    m = jnp.max(noisy, axis=-1, keepdims=True)
    e = jnp.exp(noisy - m)
    denom = jnp.sum(e, axis=-1, keepdims=True)
    if approx_recip:
        return e * pl.reciprocal(denom, approx=True)
    return e / denom


def _topk_selections(logits, k_eff):
    """selections = (logits >= k-th largest logit per row), duplicates counted."""
    bs, d = logits.shape
    idx = jax.lax.broadcasted_iota(jnp.int32, (bs, d), 1)
    vals = logits
    for _ in range(k_eff - 1):                   # knock out the top (k_eff - 1) values
        cur = jnp.max(vals, axis=-1, keepdims=True)
        first_idx = jnp.min(jnp.where(vals == cur, idx, d), axis=-1, keepdims=True)
        vals = jnp.where(idx == first_idx, NEG_BIG, vals)
    kth = jnp.max(vals, axis=-1, keepdims=True)  # k-th largest
    return (logits >= kth).astype(jnp.float32)


def _uniform_from_bits(shape):
    """Uniform [0,1) f32 samples from the in-kernel hardware PRNG (TPU only)."""
    bits = pltpu.prng_random_bits(shape)
    if bits.dtype != jnp.uint32:
        bits = pltpu.bitcast(bits, jnp.uint32)
    # top 23 random bits as mantissa -> float in [1, 2), shift to [0, 1)
    mant = (bits >> 9) | jnp.uint32(0x3F800000)
    return pltpu.bitcast(mant, jnp.float32) - 1.0


# ---------------------------------------------------------------------------
# kernels
# ---------------------------------------------------------------------------
def _kernel_hw_prng(seed_ref, logits_ref, weights_ref, selections_ref, *, tau, k, k_eff):
    # Distinct PRNG stream per grid block (per batch tile).
    pltpu.prng_seed(seed_ref[0] + pl.program_id(0))

    logits = logits_ref[...]                     # (block_bs, d_pad) f32
    bs, d = logits.shape
    inv_tau = 1.0 / tau

    def one_draw():
        u = jnp.clip(_uniform_from_bits((bs, d)), 0.0001, 0.9999)
        gumbel = -jnp.log(-jnp.log(u))
        return _softmax_last((gumbel + logits) * inv_tau, approx_recip=True)

    w_max = one_draw()
    for _ in range(k - 1):                       # k is small & static -> unrolled
        w_max = jnp.maximum(w_max, one_draw())
    weights_ref[...] = w_max

    selections_ref[...] = _topk_selections(logits, k_eff)


def _kernel_host_noise(logits_ref, unif_ref, weights_ref, selections_ref, *, tau, k, k_eff):
    # Fallback path (non-TPU backends / interpret): uniform noise comes in as input.
    logits = logits_ref[...]                     # (block_bs, d_pad) f32
    inv_tau = 1.0 / tau

    def one_draw(j):
        u = jnp.clip(unif_ref[j], 0.0001, 0.9999)    # (block_bs, d_pad)
        gumbel = -jnp.log(-jnp.log(u))
        return _softmax_last((gumbel + logits) * inv_tau, approx_recip=False)

    w_max = one_draw(0)
    for j in range(1, k):
        w_max = jnp.maximum(w_max, one_draw(j))
    weights_ref[...] = w_max

    selections_ref[...] = _topk_selections(logits, k_eff)


# ---------------------------------------------------------------------------
# wrapper
# ---------------------------------------------------------------------------
def _pick_block_bs(bs, d_pad, io_slabs, tmp_slabs):
    # Keep (double-buffered IO blocks + live f32 temporaries) well under the scoped
    # VMEM limit (conservative for v7x's 64 MiB VMEM).
    budget = 16 * 1024 * 1024
    slabs = 2 * io_slabs + tmp_slabs
    rows = budget // (slabs * d_pad * 4)
    rows = max(8, min(512, (rows // 8) * 8))     # multiple of 8 sublanes
    rows = min(rows, _round_up(bs, 8))
    return int(rows)


def sampling_layer(logits, seed, *, tau, k):
    """Pallas equivalent of SamplingLayer.forward.

    logits: (batch, d) f32
    seed:   int seed for the Gumbel noise
    returns (weights, selections), both (batch, d) f32
    """
    logits = jnp.asarray(logits, jnp.float32)
    bs, d = logits.shape
    assert k >= 1
    k_eff = int(min(k, d))
    d_pad = _round_up(d, 128)                    # lane-dense last dim

    use_hw_prng = jax.default_backend() == "tpu"

    io_slabs = 3 if use_hw_prng else 3 + k
    block_bs = _pick_block_bs(bs, d_pad, io_slabs=io_slabs, tmp_slabs=k + 4)
    bs_pad = _round_up(bs, block_bs)
    grid = (bs_pad // block_bs,)

    padded = jnp.pad(
        logits, ((0, bs_pad - bs), (0, d_pad - d)), constant_values=NEG_BIG
    )
    out_shape = (
        jax.ShapeDtypeStruct((bs_pad, d_pad), jnp.float32),
        jax.ShapeDtypeStruct((bs_pad, d_pad), jnp.float32),
    )

    if use_hw_prng:
        kernel = functools.partial(
            _kernel_hw_prng, tau=float(tau), k=int(k), k_eff=k_eff
        )
        grid_spec = pltpu.PrefetchScalarGridSpec(
            num_scalar_prefetch=1,               # seed lands in SMEM
            grid=grid,
            in_specs=[pl.BlockSpec((block_bs, d_pad), lambda i, s: (i, 0))],
            out_specs=(
                pl.BlockSpec((block_bs, d_pad), lambda i, s: (i, 0)),
                pl.BlockSpec((block_bs, d_pad), lambda i, s: (i, 0)),
            ),
        )
        weights, selections = pl.pallas_call(
            kernel,
            out_shape=out_shape,
            grid_spec=grid_spec,
            compiler_params=pltpu.CompilerParams(
                dimension_semantics=("parallel",),   # megacore sharding
                vmem_limit_bytes=32 * 1024 * 1024,
            ),
        )(jnp.asarray([seed], dtype=jnp.int32), padded)
    else:
        # TPU hardware PRNG primitives have no generic lowering -> host-side noise.
        unif = jax.random.uniform(
            jax.random.PRNGKey(int(seed)), (k, bs_pad, d_pad), dtype=jnp.float32
        )
        kernel = functools.partial(
            _kernel_host_noise, tau=float(tau), k=int(k), k_eff=k_eff
        )
        weights, selections = pl.pallas_call(
            kernel,
            out_shape=out_shape,
            grid=grid,
            in_specs=[
                pl.BlockSpec((block_bs, d_pad), lambda i: (i, 0)),
                pl.BlockSpec((k, block_bs, d_pad), lambda i: (0, i, 0)),
            ],
            out_specs=(
                pl.BlockSpec((block_bs, d_pad), lambda i: (i, 0)),
                pl.BlockSpec((block_bs, d_pad), lambda i: (i, 0)),
            ),
        )(padded, unif)

    return weights[:bs, :d], selections[:bs, :d]


if __name__ == "__main__":
    tau = 0.5
    k = 3
    batch, d = 4, 16

    key = jax.random.PRNGKey(0)
    logits = jax.random.normal(key, (batch, d), dtype=jnp.float32)

    weights, selections = sampling_layer(logits, seed=0, tau=tau, k=k)
    jax.block_until_ready((weights, selections))

    # Deterministic part (top-k selections) is exactly checkable.
    kth = jnp.sort(logits, axis=-1)[:, d - min(k, d)][:, None]
    sel_ref = (logits >= kth).astype(jnp.float32)
    assert weights.shape == (batch, d) and selections.shape == (batch, d)
    assert jnp.allclose(selections, sel_ref)
    assert bool(jnp.all(selections.sum(axis=-1) >= min(k, d)))
    # Random part: sanity checks only (softmax-max weights are finite, in [0, ~1]).
    assert bool(jnp.all(jnp.isfinite(weights)))
    assert bool(jnp.all(weights >= 0.0)) and bool(jnp.all(weights <= 1.0 + 1e-2))

    print("KERNEL_OK")
</pallas_src>

<mosaic_0001>
module attributes {stable_mosaic.version = 11 : i64} {
  func.func @_kernel_host_noise(%arg0: i32, %arg1: memref<8x128xf32, #tpu.memory_space<vmem>>, %arg2: memref<3x8x128xf32, #tpu.memory_space<vmem>>, %arg3: memref<8x128xf32, #tpu.memory_space<vmem>>, %arg4: memref<8x128xf32, #tpu.memory_space<vmem>>) attributes {dimension_semantics = [#tpu.dimension_semantics<arbitrary>], iteration_bounds = array<i64: 1>, scalar_prefetch = 0 : i64, scratch_operands = 0 : i64, tpu.core_type = #tpu.core_type<tc>, window_params = [{transform_indices = @transform_0, window_bounds = array<i64: 8, 128>}, {transform_indices = @transform_1, window_bounds = array<i64: 3, 8, 128>}, {transform_indices = @transform_2, window_bounds = array<i64: 8, 128>}, {transform_indices = @transform_3, window_bounds = array<i64: 8, 128>}]} {
    %c0 = arith.constant 0 : index
    %c0_0 = arith.constant 0 : index
    %0 = vector.load %arg1[%c0, %c0_0] : memref<8x128xf32, #tpu.memory_space<vmem>>, vector<8x128xf32>
    %c0_1 = arith.constant 0 : index
    %c0_2 = arith.constant 0 : index
    %c0_3 = arith.constant 0 : index
    %1 = vector.load %arg2[%c0_1, %c0_2, %c0_3] : memref<3x8x128xf32, #tpu.memory_space<vmem>>, vector<1x8x128xf32>
    %2 = vector.shape_cast %1 : vector<1x8x128xf32> to vector<8x128xf32>
    %cst = arith.constant 9.99999974E-5 : f32
    %cst_4 = arith.constant 0.999899983 : f32
    %3 = vector.broadcast %cst : f32 to vector<8x128xf32>
    %4 = arith.maximumf %3, %2 : vector<8x128xf32>
    %5 = vector.broadcast %cst_4 : f32 to vector<8x128xf32>
    %6 = arith.minimumf %5, %4 : vector<8x128xf32>
    %7 = math.log %6 : vector<8x128xf32>
    %cst_5 = arith.constant 0.000000e+00 : f32
    %8 = vector.broadcast %cst_5 : f32 to vector<8x128xf32>
    %9 = arith.subf %8, %7 : vector<8x128xf32>
    %10 = math.log %9 : vector<8x128xf32>
    %cst_6 = arith.constant 0.000000e+00 : f32
    %11 = vector.broadcast %cst_6 : f32 to vector<8x128xf32>
    %12 = arith.subf %11, %10 : vector<8x128xf32>
    %13 = arith.addf %12, %0 : vector<8x128xf32>
    %cst_7 = arith.constant 2.000000e+00 : f32
    %14 = vector.broadcast %cst_7 : f32 to vector<8x128xf32>
    %15 = arith.mulf %13, %14 : vector<8x128xf32>
    %cst_8 = arith.constant dense<0xFF800000> : vector<8xf32>
    %16 = vector.multi_reduction <maximumf>, %15, %cst_8 [1] : vector<8x128xf32> to vector<8xf32>
    %17 = vector.shape_cast %16 : vector<8xf32> to vector<8x1xf32>
    %18 = vector.broadcast %17 : vector<8x1xf32> to vector<8x128xf32>
    %19 = arith.subf %15, %18 : vector<8x128xf32>
    %20 = math.exp %19 : vector<8x128xf32>
    %cst_9 = arith.constant dense<0.000000e+00> : vector<8xf32>
    %21 = vector.multi_reduction <add>, %20, %cst_9 [1] : vector<8x128xf32> to vector<8xf32>
    %22 = vector.shape_cast %21 : vector<8xf32> to vector<8x1xf32>
    %23 = vector.broadcast %22 : vector<8x1xf32> to vector<8x128xf32>
    %24 = arith.divf %20, %23 : vector<8x128xf32>
    %c1 = arith.constant 1 : index
    %c0_10 = arith.constant 0 : index
    %c0_11 = arith.constant 0 : index
    %25 = vector.load %arg2[%c1, %c0_10, %c0_11] : memref<3x8x128xf32, #tpu.memory_space<vmem>>, vector<1x8x128xf32>
    %26 = vector.shape_cast %25 : vector<1x8x128xf32> to vector<8x128xf32>
    %cst_12 = arith.constant 9.99999974E-5 : f32
    %cst_13 = arith.constant 0.999899983 : f32
    %27 = vector.broadcast %cst_12 : f32 to vector<8x128xf32>
    %28 = arith.maximumf %27, %26 : vector<8x128xf32>
    %29 = vector.broadcast %cst_13 : f32 to vector<8x128xf32>
    %30 = arith.minimumf %29, %28 : vector<8x128xf32>
    %31 = math.log %30 : vector<8x128xf32>
    %cst_14 = arith.constant 0.000000e+00 : f32
    %32 = vector.broadcast %cst_14 : f32 to vector<8x128xf32>
    %33 = arith.subf %32, %31 : vector<8x128xf32>
    %34 = math.log %33 : vector<8x128xf32>
    %cst_15 = arith.constant 0.000000e+00 : f32
    %35 = vector.broadcast %cst_15 : f32 to vector<8x128xf32>
    %36 = arith.subf %35, %34 : vector<8x128xf32>
    %37 = arith.addf %36, %0 : vector<8x128xf32>
    %cst_16 = arith.constant 2.000000e+00 : f32
    %38 = vector.broadcast %cst_16 : f32 to vector<8x128xf32>
    %39 = arith.mulf %37, %38 : vector<8x128xf32>
    %cst_17 = arith.constant dense<0xFF800000> : vector<8xf32>
    %40 = vector.multi_reduction <maximumf>, %39, %cst_17 [1] : vector<8x128xf32> to vector<8xf32>
    %41 = vector.shape_cast %40 : vector<8xf32> to vector<8x1xf32>
    %42 = vector.broadcast %41 : vector<8x1xf32> to vector<8x128xf32>
    %43 = arith.subf %39, %42 : vector<8x128xf32>
    %44 = math.exp %43 : vector<8x128xf32>
    %cst_18 = arith.constant dense<0.000000e+00> : vector<8xf32>
    %45 = vector.multi_reduction <add>, %44, %cst_18 [1] : vector<8x128xf32> to vector<8xf32>
    %46 = vector.shape_cast %45 : vector<8xf32> to vector<8x1xf32>
    %47 = vector.broadcast %46 : vector<8x1xf32> to vector<8x128xf32>
    %48 = arith.divf %44, %47 : vector<8x128xf32>
    %49 = arith.maximumf %24, %48 : vector<8x128xf32>
    %c2 = arith.constant 2 : index
    %c0_19 = arith.constant 0 : index
    %c0_20 = arith.constant 0 : index
    %50 = vector.load %arg2[%c2, %c0_19, %c0_20] : memref<3x8x128xf32, #tpu.memory_space<vmem>>, vector<1x8x128xf32>
    %51 = vector.shape_cast %50 : vector<1x8x128xf32> to vector<8x128xf32>
    %cst_21 = arith.constant 9.99999974E-5 : f32
    %cst_22 = arith.constant 0.999899983 : f32
    %52 = vector.broadcast %cst_21 : f32 to vector<8x128xf32>
    %53 = arith.maximumf %52, %51 : vector<8x128xf32>
    %54 = vector.broadcast %cst_22 : f32 to vector<8x128xf32>
    %55 = arith.minimumf %54, %53 : vector<8x128xf32>
    %56 = math.log %55 : vector<8x128xf32>
    %cst_23 = arith.constant 0.000000e+00 : f32
    %57 = vector.broadcast %cst_23 : f32 to vector<8x128xf32>
    %58 = arith.subf %57, %56 : vector<8x128xf32>
    %59 = math.log %58 : vector<8x128xf32>
    %cst_24 = arith.constant 0.000000e+00 : f32
    %60 = vector.broadcast %cst_24 : f32 to vector<8x128xf32>
    %61 = arith.subf %60, %59 : vector<8x128xf32>
    %62 = arith.addf %61, %0 : vector<8x128xf32>
    %cst_25 = arith.constant 2.000000e+00 : f32
    %63 = vector.broadcast %cst_25 : f32 to vector<8x128xf32>
    %64 = arith.mulf %62, %63 : vector<8x128xf32>
    %cst_26 = arith.constant dense<0xFF800000> : vector<8xf32>
    %65 = vector.multi_reduction <maximumf>, %64, %cst_26 [1] : vector<8x128xf32> to vector<8xf32>
    %66 = vector.shape_cast %65 : vector<8xf32> to vector<8x1xf32>
    %67 = vector.broadcast %66 : vector<8x1xf32> to vector<8x128xf32>
    %68 = arith.subf %64, %67 : vector<8x128xf32>
    %69 = math.exp %68 : vector<8x128xf32>
    %cst_27 = arith.constant dense<0.000000e+00> : vector<8xf32>
    %70 = vector.multi_reduction <add>, %69, %cst_27 [1] : vector<8x128xf32> to vector<8xf32>
    %71 = vector.shape_cast %70 : vector<8xf32> to vector<8x1xf32>
    %72 = vector.broadcast %71 : vector<8x1xf32> to vector<8x128xf32>
    %73 = arith.divf %69, %72 : vector<8x128xf32>
    %74 = arith.maximumf %49, %73 : vector<8x128xf32>
    %c0_28 = arith.constant 0 : index
    %c0_29 = arith.constant 0 : index
    %75 = vector.load %arg3[%c0_28, %c0_29] : memref<8x128xf32, #tpu.memory_space<vmem>>, vector<8x128xf32>
    tpu.vector_store %arg3[%c0_28, %c0_29], %74 {strides = array<i32>} : memref<8x128xf32, #tpu.memory_space<vmem>>, vector<8x128xf32>,
    %76 = tpu.iota {dimensions = array<i32: 1>} : vector<8x128xi32>
    %cst_30 = arith.constant dense<0xFF800000> : vector<8xf32>
    %77 = vector.multi_reduction <maximumf>, %0, %cst_30 [1] : vector<8x128xf32> to vector<8xf32>
    %78 = vector.shape_cast %77 : vector<8xf32> to vector<8x1xf32>
    %79 = vector.broadcast %78 : vector<8x1xf32> to vector<8x128xf32>
    %80 = arith.cmpf oeq, %0, %79 : vector<8x128xf32>
    %c128_i32 = arith.constant 128 : i32
    %81 = vector.broadcast %c128_i32 : i32 to vector<8x128xi32>
    %82 = arith.select %80, %76, %81 : vector<8x128xi1>, vector<8x128xi32>
    %cst_31 = arith.constant dense<2147483647> : vector<8xi32>
    %83 = vector.multi_reduction <minsi>, %82, %cst_31 [1] : vector<8x128xi32> to vector<8xi32>
    %84 = vector.shape_cast %83 : vector<8xi32> to vector<8x1xi32>
    %85 = vector.broadcast %84 : vector<8x1xi32> to vector<8x128xi32>
    %86 = arith.cmpi eq, %76, %85 : vector<8x128xi32>
    %cst_32 = arith.constant -1.000000e+30 : f32
    %87 = vector.broadcast %cst_32 : f32 to vector<8x128xf32>
    %88 = arith.select %86, %87, %0 : vector<8x128xi1>, vector<8x128xf32>
    %cst_33 = arith.constant dense<0xFF800000> : vector<8xf32>
    %89 = vector.multi_reduction <maximumf>, %88, %cst_33 [1] : vector<8x128xf32> to vector<8xf32>
    %90 = vector.shape_cast %89 : vector<8xf32> to vector<8x1xf32>
    %91 = vector.broadcast %90 : vector<8x1xf32> to vector<8x128xf32>
    %92 = arith.cmpf oeq, %88, %91 : vector<8x128xf32>
    %c128_i32_34 = arith.constant 128 : i32
    %93 = vector.broadcast %c128_i32_34 : i32 to vector<8x128xi32>
    %94 = arith.select %92, %76, %93 : vector<8x128xi1>, vector<8x128xi32>
    %cst_35 = arith.constant dense<2147483647> : vector<8xi32>
    %95 = vector.multi_reduction <minsi>, %94, %cst_35 [1] : vector<8x128xi32> to vector<8xi32>
    %96 = vector.shape_cast %95 : vector<8xi32> to vector<8x1xi32>
    %97 = vector.broadcast %96 : vector<8x1xi32> to vector<8x128xi32>
    %98 = arith.cmpi eq, %76, %97 : vector<8x128xi32>
    %cst_36 = arith.constant -1.000000e+30 : f32
    %99 = vector.broadcast %cst_36 : f32 to vector<8x128xf32>
    %100 = arith.select %98, %99, %88 : vector<8x128xi1>, vector<8x128xf32>
    %cst_37 = arith.constant dense<0xFF800000> : vector<8xf32>
    %101 = vector.multi_reduction <maximumf>, %100, %cst_37 [1] : vector<8x128xf32> to vector<8xf32>
    %102 = vector.shape_cast %101 : vector<8xf32> to vector<8x1xf32>
    %103 = vector.broadcast %102 : vector<8x1xf32> to vector<8x128xf32>
    %104 = arith.cmpf oge, %0, %103 : vector<8x128xf32>
    %105 = arith.extui %104 : vector<8x128xi1> to vector<8x128xi32>
    %106 = arith.sitofp %105 : vector<8x128xi32> to vector<8x128xf32>
    %c0_38 = arith.constant 0 : index
    %c0_39 = arith.constant 0 : index
    %107 = vector.load %arg4[%c0_38, %c0_39] : memref<8x128xf32, #tpu.memory_space<vmem>>, vector<8x128xf32>
    tpu.vector_store %arg4[%c0_38, %c0_39], %106 {strides = array<i32>} : memref<8x128xf32, #tpu.memory_space<vmem>>, vector<8x128xf32>,
    return
  }
  func.func @transform_0(%arg0: i32) -> (i32, i32) {
    %c0_i32 = arith.constant 0 : i32
    %c0_i32_0 = arith.constant 0 : i32
    return %arg0, %c0_i32 : i32, i32
  }
  func.func @transform_1(%arg0: i32) -> (i32, i32, i32) {
    %c0_i32 = arith.constant 0 : i32
    %c0_i32_0 = arith.constant 0 : i32
    %c0_i32_1 = arith.constant 0 : i32
    return %c0_i32, %arg0, %c0_i32_0 : i32, i32, i32
  }
  func.func @transform_2(%arg0: i32) -> (i32, i32) {
    %c0_i32 = arith.constant 0 : i32
    %c0_i32_0 = arith.constant 0 : i32
    return %arg0, %c0_i32 : i32, i32
  }
  func.func @transform_3(%arg0: i32) -> (i32, i32) {
    %c0_i32 = arith.constant 0 : i32
    %c0_i32_0 = arith.constant 0 : i32
    return %arg0, %c0_i32 : i32, i32
  }
}

</mosaic_0001>

<llo_original>
// kernel: tpu_custom_call.1
$region0: #{tpu_custom_call.1}
  #allocation0 [shape = 'u32[]', space=smem, size = 0x4, offset = 0x4, fixed_abs, tag = 'smem constant byte address 0x4 - core index']
  #allocation1 [shape = 'u32[144,128]{1,0:T(1,128)}', space=vmem, size = 0x12000, scoped, tag = 'internal scratch']
  %s0 = inlined_call_operand.hbm [shape: f32[8,128], index: 0, kind: input, shape index: {}]
  %s1 = inlined_call_operand.hbm [shape: f32[3,8,128], index: 1, kind: input, shape index: {}]
  %s2 = inlined_call_operand.hbm [shape: f32[8,128], index: 2, kind: output, shape index: {0}]
  %s3 = inlined_call_operand.hbm [shape: f32[8,128], index: 3, kind: output, shape index: {1}]
  %4 = xla_tuple %s2, %s3
  %s5 = sld [smem:[#allocation0]]
  $region34: #{tpu_custom_call.1} parent=0
    _
  %s7 = ssub.s32 1, %s5
  %s8 = scalar_select 0, %s7, %s5
  $region1: #{tpu_custom_call.1} parent=0
    #allocation2 [shape = 'u8[4096]{0}', space=vmem, size = 0x1000, scoped, tag = 'input window, operand 0, single buffered']
    #allocation3 [shape = 's32[1]{0}', space=sflag, size = 0x4, scoped, tag = 'scoped memory for tpu_custom_call.1']
    #allocation4 [shape = 's32[1]{0}', space=sflag, size = 0x4, scoped, tag = 'scoped memory for tpu_custom_call.1']
    #allocation5 [shape = 'u8[12288]{0}', space=vmem, size = 0x3000, scoped, tag = 'input window, operand 1, single buffered']
    #allocation6 [shape = 's32[1]{0}', space=sflag, size = 0x4, scoped, tag = 'scoped memory for tpu_custom_call.1']
    #allocation7 [shape = 'u8[4096]{0}', space=vmem, size = 0x1000, scoped, tag = 'output window, operand 0, single buffered']
    #allocation8 [shape = 'u8[4096]{0}', space=vmem, size = 0x1000, scoped, tag = 'output window, operand 1, single buffered']
    #allocation9 [shape = 's32[1]{0}', space=sflag, size = 0x4, scoped, tag = 'scoped memory for tpu_custom_call.1']
    %9 = vsyncpa [#allocation3], 0
    %10 = vsyncpa [#allocation6], 0
    %11 = vsyncpa [#allocation4], 0
    %12 = vsyncpa [#allocation9], 0
    // Predicated region
    $region2: #{tpu_custom_call.1} parent=1 // pred_check
      _
    $region3: #{tpu_custom_call.1} parent=1 // pred_check_branch
      %14 = sbr.rel (0) target = $region5
    $region4: #{tpu_custom_call.1} parent=1 // pred_region
      %s16 = ssub.s32 128, 128
      %17 = vsyncadd [#allocation3], %s16
      %s19 = sshll.u32 [#allocation2], 4
      %s20 = int_to_ptr.vmem [resolvable:$true] %s19
      %22 = dma.hbm_to_vmem [thread:$0]  %s0, 128, %s20, [#allocation3]
    $region5: #{tpu_custom_call.1} parent=1 // pred_fallthru
      _
    // Predicated region
    $region6: #{tpu_custom_call.1} parent=1 // pred_check
      _
    $region7: #{tpu_custom_call.1} parent=1 // pred_check_branch
      %24 = sbr.rel (0) target = $region9
    $region8: #{tpu_custom_call.1} parent=1 // pred_region
      %s26 = ssub.s32 384, 384
      %27 = vsyncadd [#allocation6], %s26
      %s28 = sshll.u32 [#allocation5], 4
      %s29 = int_to_ptr.vmem [resolvable:$true] %s28
      %34 = dma.hbm_to_vmem [thread:$0]  %s1, 384, %s29, [#allocation6], 128, 128, 8
    $region9: #{tpu_custom_call.1} parent=1 // pred_fallthru
      _
    // Predicated region
    $region10: #{tpu_custom_call.1} parent=1 // pred_check
      _
    $region11: #{tpu_custom_call.1} parent=1 // pred_check_branch
      %36 = sbr.rel (0) target = $region13
    $region12: #{tpu_custom_call.1} parent=1 // pred_region
      %37 = dma.done [#allocation3], 128
    $region13: #{tpu_custom_call.1} parent=1 // pred_fallthru
      _
    // Predicated region
    $region14: #{tpu_custom_call.1} parent=1 // pred_check
      _
    $region15: #{tpu_custom_call.1} parent=1 // pred_check_branch
      %39 = sbr.rel (0) target = $region17
    $region16: #{tpu_custom_call.1} parent=1 // pred_region
      %40 = dma.done [#allocation6], 384
    $region17: #{tpu_custom_call.1} parent=1 // pred_fallthru
      _
    %v41 = vld [vmem:[#allocation2] sm:$0xff]
    %v42 = vld [vmem:[#allocation5] sm:$0xff]
    %v43 = vmax.f32 %v42, 0.0001
    %v44 = vmin.f32 %v43, 0.9999
    %v45 = vlog2.pop %v44
    %v46 = vmul.f32 %v45, 0.6931472
    %v47 = vsub.f32 0.0, %v46
    %v48 = vlog2.pop %v47
    %v49 = vmul.f32 %v48, 0.6931472
    %v50 = vsub.f32 0.0, %v49
    %v51 = vadd.f32 %v50, %v41
    %v52 = vmul.f32 %v51, 2.0
    %53 = vmax.xlane.f32.xlu0 %v52
    %v54 = vpop.xlane.xlu0 %53
    %v55 = vsub.f32 %v52, %v54
    %v56 = vmul.f32 %v55, 1.442695
    %v57 = vpow.pop %v56
    %58 = vadd.xlane.f32.xlu0 %v57
    %v59 = vpop.xlane.xlu0 %58
    %v60 = vrcp.pop %v59
    %v61 = vmul.f32 %v57, %v60
    %s62 = scalar_lea.vmem [#allocation5], 8
    %v63 = vld [vmem:[%s62] sm:$0xff]
    %v64 = vmax.f32 %v63, 0.0001
    %v65 = vmin.f32 %v64, 0.9999
    %v66 = vlog2.pop %v65
    %v67 = vmul.f32 %v66, 0.6931472
    %v68 = vsub.f32 0.0, %v67
    %v69 = vlog2.pop %v68
    %v70 = vmul.f32 %v69, 0.6931472
    %v71 = vsub.f32 0.0, %v70
    %v72 = vadd.f32 %v71, %v41
    %v73 = vmul.f32 %v72, 2.0
    %74 = vmax.xlane.f32.xlu0 %v73
    %v75 = vpop.xlane.xlu0 %74
    %v76 = vsub.f32 %v73, %v75
    %v77 = vmul.f32 %v76, 1.442695
    %v78 = vpow.pop %v77
    %79 = vadd.xlane.f32.xlu0 %v78
    %v80 = vpop.xlane.xlu0 %79
    %v81 = vrcp.pop %v80
    %v82 = vmul.f32 %v78, %v81
    %v83 = vmax.f32 %v61, %v82
    %s84 = scalar_lea.vmem [#allocation5], 16
    %v85 = vld [vmem:[%s84] sm:$0xff]
    %v86 = vmax.f32 %v85, 0.0001
    %v87 = vmin.f32 %v86, 0.9999
    %v88 = vlog2.pop %v87
    %v89 = vmul.f32 %v88, 0.6931472
    %v90 = vsub.f32 0.0, %v89
    %v91 = vlog2.pop %v90
    %v92 = vmul.f32 %v91, 0.6931472
    %v93 = vsub.f32 0.0, %v92
    %v94 = vadd.f32 %v93, %v41
    %v95 = vmul.f32 %v94, 2.0
    %96 = vmax.xlane.f32.xlu0 %v95
    %v97 = vpop.xlane.xlu0 %96
    %v98 = vsub.f32 %v95, %v97
    %v99 = vmul.f32 %v98, 1.442695
    %v100 = vpow.pop %v99
    %101 = vadd.xlane.f32.xlu0 %v100
    %v102 = vpop.xlane.xlu0 %101
    %v103 = vrcp.pop %v102
    %v104 = vmul.f32 %v100, %v103
    %v105 = vmax.f32 %v83, %v104
    %106 = vst [vmem:[#allocation7] sm:$0xff] %v105
    %v107 = vlaneseq
    %v108 = vand.u32 %v107, 127
    %109 = vmax.xlane.f32.xlu0 %v41
    %v110 = vpop.xlane.xlu0 %109
    %vm111 = vcmp.eq.f32.partialorder %v41, %v110
    %v112 = vsel %vm111, %v108, 128
    %v113 = vand.u32 %v112, 65535
    %v114 = vshra.s32 %v112, 16
    %v115 = vcvt.s32.f32 %v113
    %v116 = vcvt.s32.f32 %v114
    %117 = vmin.xlane.f32.xlu0 %v116
    %v118 = vpop.xlane.xlu0 %117
    %vm119 = vcmp.eq.f32.partialorder %v116, %v118
    %v120 = vsel %vm119, %v115, inf
    %121 = vmin.xlane.f32.xlu0 %v120
    %v122 = vpop.xlane.xlu0 %121
    %v123 = vcvt.f32.s32 %v122
    %v124 = vcvt.f32.s32 %v118
    %v125 = vshll.u32 %v124, 16
    %v126 = vadd.s32 %v125, %v123
    %vm127 = vcmp.eq.s32.totalorder %v108, %v126
    %v128 = vsel %vm127, -1e+30, %v41
    %129 = vmax.xlane.f32.xlu0 %v128
    %v130 = vpop.xlane.xlu0 %129
    %vm131 = vcmp.eq.f32.partialorder %v128, %v130
    %v132 = vsel %vm131, %v108, 128
    %v133 = vand.u32 %v132, 65535
    %v134 = vshra.s32 %v132, 16
    %v135 = vcvt.s32.f32 %v133
    %v136 = vcvt.s32.f32 %v134
    %137 = vmin.xlane.f32.xlu0 %v136
    %v138 = vpop.xlane.xlu0 %137
    %vm139 = vcmp.eq.f32.partialorder %v136, %v138
    %v140 = vsel %vm139, %v135, inf
    %141 = vmin.xlane.f32.xlu0 %v140
    %v142 = vpop.xlane.xlu0 %141
    %v143 = vcvt.f32.s32 %v142
    %v144 = vcvt.f32.s32 %v138
    %v145 = vshll.u32 %v144, 16
    %v146 = vadd.s32 %v145, %v143
    %vm147 = vcmp.eq.s32.totalorder %v108, %v146
    %v148 = vsel %vm147, -1e+30, %v128
    %149 = vmax.xlane.f32.xlu0 %v148
    %v150 = vpop.xlane.xlu0 %149
    %vm151 = vcmp.ge.f32.partialorder %v41, %v150
    %v152 = vsel %vm151, 1, 0
    %v153 = vcvt.s32.f32 %v152
    %154 = vst [vmem:[#allocation8] sm:$0xff] %v153
    // Predicated region
    $region18: #{tpu_custom_call.1} parent=1 // pred_check
      _
    $region19: #{tpu_custom_call.1} parent=1 // pred_check_branch
      %156 = sbr.rel (0) target = $region21
    $region20: #{tpu_custom_call.1} parent=1 // pred_region
      %s158 = ssub.s32 128, 128
      %159 = vsyncadd [#allocation4], %s158
      %s161 = sshll.u32 [#allocation7], 4
      %s162 = int_to_ptr.vmem [resolvable:$true] %s161
      %164 = dma.vmem_to_hbm [thread:$0]  %s162, 128, %s2, [#allocation4]
    $region21: #{tpu_custom_call.1} parent=1 // pred_fallthru
      _
    // Predicated region
    $region22: #{tpu_custom_call.1} parent=1 // pred_check
      _
    $region23: #{tpu_custom_call.1} parent=1 // pred_check_branch
      %166 = sbr.rel (0) target = $region25
    $region24: #{tpu_custom_call.1} parent=1 // pred_region
      %s168 = ssub.s32 128, 128
      %169 = vsyncadd [#allocation9], %s168
      %s171 = sshll.u32 [#allocation8], 4
      %s172 = int_to_ptr.vmem [resolvable:$true] %s171
      %174 = dma.vmem_to_hbm [thread:$0]  %s172, 128, %s3, [#allocation9]
    $region25: #{tpu_custom_call.1} parent=1 // pred_fallthru
      _
    // Predicated region
    $region26: #{tpu_custom_call.1} parent=1 // pred_check
      _
    $region27: #{tpu_custom_call.1} parent=1 // pred_check_branch
      %176 = sbr.rel (0) target = $region29
    $region28: #{tpu_custom_call.1} parent=1 // pred_region
      %177 = dma.done [#allocation4], 128
    $region29: #{tpu_custom_call.1} parent=1 // pred_fallthru
      _
    // Predicated region
    $region30: #{tpu_custom_call.1} parent=1 // pred_check
      _
    $region31: #{tpu_custom_call.1} parent=1 // pred_check_branch
      %179 = sbr.rel (0) target = $region33
    $region32: #{tpu_custom_call.1} parent=1 // pred_region
      %180 = dma.done [#allocation9], 128
    $region33: #{tpu_custom_call.1} parent=1 // pred_fallthru
      _
    %181 = vsyncpa [#allocation3], 1
    %182 = vsyncpa [#allocation6], 1
    %183 = vsyncpa [#allocation4], 1
    %184 = vsyncpa [#allocation9], 1

</llo_original>
